<compile_context>
chip_gen: v7x
topology: tpu7x:2x2x1
jax: 0.10.0
libtpu: 0.0.40
codegen_flags: <defaults>
</compile_context>

<pallas_src>
import functools
import math

import jax
import jax.numpy as jnp
from jax.experimental import pallas as pl
from jax.experimental.pallas import tpu as pltpu


def _resblock_kernel(x_ref, w1_ref, w2_ref, g1_ref, b1_ref, g2_ref, b2_ref,
                     alpha_ref, o_ref, *, H, W, C, inv_m, eps):
    f32 = jnp.float32
    bf16 = jnp.bfloat16

    x = x_ref[...].astype(f32)                        # (R, Wc) lane-dense slab
    R, Wc = x.shape

    # Vertical zero-padding masks (per image): slab row r is image row r % H.
    # The h-1 tap must be zero at h==0, the h+1 tap at h==H-1 (this also stops
    # rows leaking across image boundaries in the stacked slab).
    row = jax.lax.broadcasted_iota(jnp.int32, (R, Wc), 0)
    h = row % H
    not_top = h != 0
    not_bot = h != (H - 1)

    def conv3x3(z, w_ref):
        # 3x3 "same" conv as ONE K = 3*W*C bf16 matmul with f32 accumulation:
        #   vertical taps via XLU sublane rolls + boundary masks,
        #   horizontal taps + W padding folded into the band matrix,
        #   all three dy bands stacked along K.
        zm1 = jnp.where(not_top, pltpu.roll(z, shift=1, axis=0), 0.0)      # row h-1
        zp1 = jnp.where(not_bot, pltpu.roll(z, shift=R - 1, axis=0), 0.0)  # row h+1
        zin = jnp.concatenate([zm1, z, zp1], axis=1).astype(bf16)          # (R, 3*Wc)
        return jnp.dot(zin, w_ref[...], preferred_element_type=f32)        # (R, Wc) f32

    def bn_scale_offset(y, g_ref, b_ref):
        # Training-mode BN stats in f32.  Strided lane-group tree reduce: each
        # roll+add step folds lane groups of the same channel together; after
        # log2(W) steps every lane holds its channel's total, replicated
        # lane-dense, so scale/offset come out directly in (1, Wc) layout.
        s1 = jnp.sum(y, axis=0, keepdims=True)        # (1, Wc)
        s2 = jnp.sum(y * y, axis=0, keepdims=True)    # (1, Wc)
        for k in range(int(math.log2(W))):
            sh = C << k
            s1 = s1 + pltpu.roll(s1, shift=sh, axis=1)
            s2 = s2 + pltpu.roll(s2, shift=sh, axis=1)
        mean = s1 * inv_m
        var = s2 * inv_m - mean * mean                # biased variance
        scale = g_ref[...] * jax.lax.rsqrt(var + eps) # (1, Wc) lane-dense
        offset = b_ref[...] - mean * scale
        return scale, offset

    # conv1 -> BN1 -> PReLU  (normalize + activation fused into one pass)
    y1 = conv3x3(x, w1_ref)
    sc1, of1 = bn_scale_offset(y1, g1_ref, b1_ref)
    a = alpha_ref[0]
    z = y1 * sc1 + of1
    z = jnp.where(z >= 0.0, z, a * z)

    # conv2 -> BN2 -> residual add  (normalize + add fused, lane-dense store)
    y2 = conv3x3(z, w2_ref)
    sc2, of2 = bn_scale_offset(y2, g2_ref, b2_ref)
    o_ref[...] = (x + y2 * sc2 + of2).astype(o_ref.dtype)


def prepare_residual_block_params(w1_oihw, w2_oihw, gamma1, beta1, gamma2,
                                  beta2, W):
    """Once-per-weight-update prep (NOT per forward call).

    Folds each 3x3 OIHW conv weight into a bf16 block-tridiagonal
    (3*W*C, W*C) band matrix (horizontal taps + W zero-padding in the
    contraction, the 3 vertical bands stacked along K), and expands BN
    gamma/beta to lane-dense (1, W*C) f32 rows.
    """
    f32 = jnp.float32
    C = w1_oihw.shape[0]
    Wc = W * C

    # big[dy][wi*C+ci, wo*C+co] = w[dy, wi-wo+1, ci, co] for |wi-wo| <= 1 else 0.
    # Missing rows at wi = -1 / wi = W implement the zero padding along W.
    sel = jnp.stack([jnp.eye(W, k=1 - dx, dtype=f32) for dx in range(3)])  # (3,W,W)

    def band(w_oihw):
        w_hwio = jnp.transpose(w_oihw, (2, 3, 1, 0)).astype(f32)   # (dy,dx,ci,co)
        big = jnp.einsum("xab,yxio->yaibo", sel, w_hwio)           # (3,W,C,W,C)
        return big.reshape(3 * Wc, Wc).astype(jnp.bfloat16)        # bf16 MXU operand

    def lane_dense(v):  # (C,) -> (1, W*C): lane w*C+c holds v[c]
        return jnp.tile(v.astype(f32).reshape(1, C), (1, W))

    return dict(w1=band(w1_oihw), w2=band(w2_oihw),
                g1=lane_dense(gamma1), b1=lane_dense(beta1),
                g2=lane_dense(gamma2), b2=lane_dense(beta2))


def residual_block_slab(xs, params, alpha, *, N, C, H, W, eps=1e-5):
    """Forward on a lane-dense (N*H, W*C) activation slab.

    For a full SRGAN, keep activations in this layout across all residual
    blocks and only convert NCHW <-> slab once per network.
    """
    R, Wc = N * H, W * C
    assert xs.shape == (R, Wc)
    assert W & (W - 1) == 0, "lane-group tree reduce assumes power-of-two W"

    vmem = pl.BlockSpec(memory_space=pltpu.MemorySpace.VMEM)
    smem = pl.BlockSpec(memory_space=pltpu.MemorySpace.SMEM)
    alpha_arr = jnp.asarray(alpha, jnp.float32).reshape(1)

    return pl.pallas_call(
        functools.partial(_resblock_kernel, H=H, W=W, C=C,
                          inv_m=1.0 / float(N * H * W), eps=eps),
        out_shape=jax.ShapeDtypeStruct((R, Wc), xs.dtype),
        in_specs=[vmem] * 7 + [smem],
        out_specs=vmem,
    )(xs, params["w1"], params["w2"], params["g1"], params["b1"],
      params["g2"], params["b2"], alpha_arr)


def residual_block(x_nchw, params, alpha, eps=1e-5):
    # Convenience wrapper: NCHW -> lane-dense slab -> kernel -> NCHW.
    N, C, H, W = x_nchw.shape
    xs = jnp.transpose(x_nchw, (0, 2, 3, 1)).reshape(N * H, W * C)
    out = residual_block_slab(xs, params, alpha, N=N, C=C, H=H, W=W, eps=eps)
    return jnp.transpose(out.reshape(N, H, W, C), (0, 3, 1, 2))


def _reference(x, w1, w2, g1, b1, g2, b2, alpha, eps=1e-5):
    # Pure-JAX reference (NCHW / OIHW, same semantics as the PyTorch module).
    def conv(x, w):
        return jax.lax.conv_general_dilated(
            x, w, (1, 1), ((1, 1), (1, 1)),
            dimension_numbers=("NCHW", "OIHW", "NCHW"))

    def bn(y, g, b):
        mean = jnp.mean(y, axis=(0, 2, 3), keepdims=True)
        var = jnp.mean((y - mean) ** 2, axis=(0, 2, 3), keepdims=True)
        return ((y - mean) * jax.lax.rsqrt(var + eps) * g.reshape(1, -1, 1, 1)
                + b.reshape(1, -1, 1, 1))

    y = conv(x, w1)
    y = bn(y, g1, b1)
    y = jnp.where(y >= 0.0, y, alpha * y)
    y = conv(y, w2)
    y = bn(y, g2, b2)
    return x + y


if __name__ == "__main__":
    N, C, H, W = 2, 8, 16, 16           # W * C = 128 -> fully lane-dense slabs
    key = jax.random.PRNGKey(0)
    k1, k2, k3, k4, k5, k6, k7 = jax.random.split(key, 7)

    x = jax.random.normal(k1, (N, C, H, W), jnp.float32)

    # Conv2d default init: U(-1/sqrt(fan_in), 1/sqrt(fan_in)), fan_in = C*3*3
    bound = 1.0 / math.sqrt(C * 3 * 3)
    w1 = jax.random.uniform(k2, (C, C, 3, 3), jnp.float32, -bound, bound)
    w2 = jax.random.uniform(k3, (C, C, 3, 3), jnp.float32, -bound, bound)

    # BatchNorm affine params (non-trivial, to exercise the math)
    gamma1 = 1.0 + 0.1 * jax.random.normal(k4, (C,), jnp.float32)
    beta1 = 0.1 * jax.random.normal(k5, (C,), jnp.float32)
    gamma2 = 1.0 + 0.1 * jax.random.normal(k6, (C,), jnp.float32)
    beta2 = 0.1 * jax.random.normal(k7, (C,), jnp.float32)

    alpha = 0.25                        # PReLU default init

    # Band matrices / lane-dense BN params are built once per weight update.
    params = prepare_residual_block_params(w1, w2, gamma1, beta1, gamma2,
                                           beta2, W)

    out = residual_block(x, params, alpha)
    out = jax.block_until_ready(out)

    ref = _reference(x, w1, w2, gamma1, beta1, gamma2, beta2, alpha)
    assert out.shape == x.shape and out.dtype == x.dtype
    err = float(jnp.max(jnp.abs(out - ref)))
    # bf16 MXU operands with f32 accumulation + f32 BN stats: expected
    # worst-case error is O(1e-2) on O(1) activations.
    assert jnp.allclose(out, ref, rtol=3e-2, atol=3e-2), err

    print("KERNEL_OK")
</pallas_src>

<mosaic_0001>
module attributes {stable_mosaic.version = 11 : i64} {
  func.func @_resblock_kernel(%arg0: memref<32x128xf32, #tpu.memory_space<vmem>>, %arg1: memref<384x128xbf16, #tpu.memory_space<vmem>>, %arg2: memref<384x128xbf16, #tpu.memory_space<vmem>>, %arg3: memref<1x128xf32, #tpu.memory_space<vmem>>, %arg4: memref<1x128xf32, #tpu.memory_space<vmem>>, %arg5: memref<1x128xf32, #tpu.memory_space<vmem>>, %arg6: memref<1x128xf32, #tpu.memory_space<vmem>>, %arg7: memref<1xf32, #tpu.memory_space<smem>>, %arg8: memref<32x128xf32, #tpu.memory_space<vmem>>) attributes {dimension_semantics = [], scalar_prefetch = 0 : i64, scratch_operands = 0 : i64, tpu.core_type = #tpu.core_type<tc>} {
    %c0 = arith.constant 0 : index
    %c0_0 = arith.constant 0 : index
    %0 = vector.load %arg0[%c0, %c0_0] : memref<32x128xf32, #tpu.memory_space<vmem>>, vector<32x128xf32>
    %1 = tpu.iota {dimensions = array<i32: 0>} : vector<32x128xi32>
    %c16_i32 = arith.constant 16 : i32
    %c0_i32 = arith.constant 0 : i32
    %2 = arith.cmpi eq, %c16_i32, %c0_i32 : i32
    %c1_i32 = arith.constant 1 : i32
    %3 = arith.select %2, %c1_i32, %c16_i32 : i32
    %4 = vector.broadcast %3 : i32 to vector<32x128xi32>
    %5 = arith.remsi %1, %4 : vector<32x128xi32>
    %c0_i32_1 = arith.constant 0 : i32
    %6 = vector.broadcast %c0_i32_1 : i32 to vector<32x128xi32>
    %7 = arith.cmpi ne, %5, %6 : vector<32x128xi32>
    %c0_i32_2 = arith.constant 0 : i32
    %8 = vector.broadcast %c0_i32_2 : i32 to vector<32x128xi32>
    %9 = arith.cmpi slt, %5, %8 : vector<32x128xi32>
    %c0_i32_3 = arith.constant 0 : i32
    %10 = arith.cmpi slt, %3, %c0_i32_3 : i32
    %11 = vector.broadcast %10 : i1 to vector<32x128xi1>
    %12 = vector.broadcast %11 : vector<32x128xi1> to vector<32x128xi1>
    %13 = arith.xori %9, %12 : vector<32x128xi1>
    %14 = arith.andi %13, %7 : vector<32x128xi1>
    %15 = vector.broadcast %3 : i32 to vector<32x128xi32>
    %16 = arith.addi %5, %15 : vector<32x128xi32>
    %17 = arith.select %14, %16, %5 : vector<32x128xi1>, vector<32x128xi32>
    %c0_i32_4 = arith.constant 0 : i32
    %18 = vector.broadcast %c0_i32_4 : i32 to vector<32x128xi32>
    %19 = arith.cmpi ne, %17, %18 : vector<32x128xi32>
    %c15_i32 = arith.constant 15 : i32
    %20 = vector.broadcast %c15_i32 : i32 to vector<32x128xi32>
    %21 = arith.cmpi ne, %17, %20 : vector<32x128xi32>
    %c1_i32_5 = arith.constant 1 : i32
    %22 = tpu.dynamic_rotate %0 by %c1_i32_5 dim 0 : vector<32x128xf32>, i32 -> vector<32x128xf32>
    %cst = arith.constant 0.000000e+00 : f32
    %23 = vector.broadcast %cst : f32 to vector<32x128xf32>
    %24 = arith.select %19, %22, %23 : vector<32x128xi1>, vector<32x128xf32>
    %c31_i32 = arith.constant 31 : i32
    %25 = tpu.dynamic_rotate %0 by %c31_i32 dim 0 : vector<32x128xf32>, i32 -> vector<32x128xf32>
    %cst_6 = arith.constant 0.000000e+00 : f32
    %26 = vector.broadcast %cst_6 : f32 to vector<32x128xf32>
    %27 = arith.select %21, %25, %26 : vector<32x128xi1>, vector<32x128xf32>
    %28 = tpu.concatenate %24, %0, %27 in 1 : vector<32x128xf32>, vector<32x128xf32>, vector<32x128xf32> -> vector<32x384xf32>
    %29 = arith.truncf %28 : vector<32x384xf32> to vector<32x384xbf16>
    %c0_7 = arith.constant 0 : index
    %c0_8 = arith.constant 0 : index
    %30 = vector.load %arg1[%c0_7, %c0_8] : memref<384x128xbf16, #tpu.memory_space<vmem>>, vector<384x128xbf16>
    %cst_9 = arith.constant dense<0.000000e+00> : vector<32x128xf32>
    %31 = tpu.matmul %29, %30, %cst_9 {dimension_numbers = #tpu.dot_dimension_numbers<[1], [0], [0], [1], [0, 0, 1, 1], [], []>} : vector<32x384xbf16>, vector<384x128xbf16>, vector<32x128xf32> -> vector<32x128xf32>
    %cst_10 = arith.constant dense<0.000000e+00> : vector<128xf32>
    %32 = vector.multi_reduction <add>, %31, %cst_10 [0] : vector<32x128xf32> to vector<128xf32>
    %33 = vector.shape_cast %32 : vector<128xf32> to vector<1x128xf32>
    %34 = arith.mulf %31, %31 : vector<32x128xf32>
    %cst_11 = arith.constant dense<0.000000e+00> : vector<128xf32>
    %35 = vector.multi_reduction <add>, %34, %cst_11 [0] : vector<32x128xf32> to vector<128xf32>
    %36 = vector.shape_cast %35 : vector<128xf32> to vector<1x128xf32>
    %c8_i32 = arith.constant 8 : i32
    %37 = tpu.dynamic_rotate %33 by %c8_i32 dim 1 : vector<1x128xf32>, i32 -> vector<1x128xf32>
    %38 = arith.addf %33, %37 : vector<1x128xf32>
    %c8_i32_12 = arith.constant 8 : i32
    %39 = tpu.dynamic_rotate %36 by %c8_i32_12 dim 1 : vector<1x128xf32>, i32 -> vector<1x128xf32>
    %40 = arith.addf %36, %39 : vector<1x128xf32>
    %c16_i32_13 = arith.constant 16 : i32
    %41 = tpu.dynamic_rotate %38 by %c16_i32_13 dim 1 : vector<1x128xf32>, i32 -> vector<1x128xf32>
    %42 = arith.addf %38, %41 : vector<1x128xf32>
    %c16_i32_14 = arith.constant 16 : i32
    %43 = tpu.dynamic_rotate %40 by %c16_i32_14 dim 1 : vector<1x128xf32>, i32 -> vector<1x128xf32>
    %44 = arith.addf %40, %43 : vector<1x128xf32>
    %c32_i32 = arith.constant 32 : i32
    %45 = tpu.dynamic_rotate %42 by %c32_i32 dim 1 : vector<1x128xf32>, i32 -> vector<1x128xf32>
    %46 = arith.addf %42, %45 : vector<1x128xf32>
    %c32_i32_15 = arith.constant 32 : i32
    %47 = tpu.dynamic_rotate %44 by %c32_i32_15 dim 1 : vector<1x128xf32>, i32 -> vector<1x128xf32>
    %48 = arith.addf %44, %47 : vector<1x128xf32>
    %c64_i32 = arith.constant 64 : i32
    %49 = tpu.dynamic_rotate %46 by %c64_i32 dim 1 : vector<1x128xf32>, i32 -> vector<1x128xf32>
    %50 = arith.addf %46, %49 : vector<1x128xf32>
    %c64_i32_16 = arith.constant 64 : i32
    %51 = tpu.dynamic_rotate %48 by %c64_i32_16 dim 1 : vector<1x128xf32>, i32 -> vector<1x128xf32>
    %52 = arith.addf %48, %51 : vector<1x128xf32>
    %cst_17 = arith.constant 0.001953125 : f32
    %53 = vector.broadcast %cst_17 : f32 to vector<1x128xf32>
    %54 = arith.mulf %50, %53 : vector<1x128xf32>
    %cst_18 = arith.constant 0.001953125 : f32
    %55 = vector.broadcast %cst_18 : f32 to vector<1x128xf32>
    %56 = arith.mulf %52, %55 : vector<1x128xf32>
    %57 = arith.mulf %54, %54 : vector<1x128xf32>
    %58 = arith.subf %56, %57 : vector<1x128xf32>
    %c0_19 = arith.constant 0 : index
    %c0_20 = arith.constant 0 : index
    %59 = vector.load %arg3[%c0_19, %c0_20] : memref<1x128xf32, #tpu.memory_space<vmem>>, vector<1x128xf32>
    %cst_21 = arith.constant 9.99999974E-6 : f32
    %60 = vector.broadcast %cst_21 : f32 to vector<1x128xf32>
    %61 = arith.addf %58, %60 : vector<1x128xf32>
    %62 = math.rsqrt %61 : vector<1x128xf32>
    %63 = arith.mulf %59, %62 : vector<1x128xf32>
    %c0_22 = arith.constant 0 : index
    %c0_23 = arith.constant 0 : index
    %64 = vector.load %arg4[%c0_22, %c0_23] : memref<1x128xf32, #tpu.memory_space<vmem>>, vector<1x128xf32>
    %65 = arith.mulf %54, %63 : vector<1x128xf32>
    %66 = arith.subf %64, %65 : vector<1x128xf32>
    %c0_24 = arith.constant 0 : index
    %67 = memref.load %arg7[%c0_24] : memref<1xf32, #tpu.memory_space<smem>>
    %68 = vector.broadcast %63 : vector<1x128xf32> to vector<32x128xf32>
    %69 = arith.mulf %31, %68 : vector<32x128xf32>
    %70 = vector.broadcast %66 : vector<1x128xf32> to vector<32x128xf32>
    %71 = arith.addf %69, %70 : vector<32x128xf32>
    %cst_25 = arith.constant 0.000000e+00 : f32
    %72 = vector.broadcast %cst_25 : f32 to vector<32x128xf32>
    %73 = arith.cmpf oge, %71, %72 : vector<32x128xf32>
    %74 = vector.broadcast %67 : f32 to vector<32x128xf32>
    %75 = arith.mulf %74, %71 : vector<32x128xf32>
    %76 = arith.select %73, %71, %75 : vector<32x128xi1>, vector<32x128xf32>
    %c1_i32_26 = arith.constant 1 : i32
    %77 = tpu.dynamic_rotate %76 by %c1_i32_26 dim 0 : vector<32x128xf32>, i32 -> vector<32x128xf32>
    %cst_27 = arith.constant 0.000000e+00 : f32
    %78 = vector.broadcast %cst_27 : f32 to vector<32x128xf32>
    %79 = arith.select %19, %77, %78 : vector<32x128xi1>, vector<32x128xf32>
    %c31_i32_28 = arith.constant 31 : i32
    %80 = tpu.dynamic_rotate %76 by %c31_i32_28 dim 0 : vector<32x128xf32>, i32 -> vector<32x128xf32>
    %cst_29 = arith.constant 0.000000e+00 : f32
    %81 = vector.broadcast %cst_29 : f32 to vector<32x128xf32>
    %82 = arith.select %21, %80, %81 : vector<32x128xi1>, vector<32x128xf32>
    %83 = tpu.concatenate %79, %76, %82 in 1 : vector<32x128xf32>, vector<32x128xf32>, vector<32x128xf32> -> vector<32x384xf32>
    %84 = arith.truncf %83 : vector<32x384xf32> to vector<32x384xbf16>
    %c0_30 = arith.constant 0 : index
    %c0_31 = arith.constant 0 : index
    %85 = vector.load %arg2[%c0_30, %c0_31] : memref<384x128xbf16, #tpu.memory_space<vmem>>, vector<384x128xbf16>
    %cst_32 = arith.constant dense<0.000000e+00> : vector<32x128xf32>
    %86 = tpu.matmul %84, %85, %cst_32 {dimension_numbers = #tpu.dot_dimension_numbers<[1], [0], [0], [1], [0, 0, 1, 1], [], []>} : vector<32x384xbf16>, vector<384x128xbf16>, vector<32x128xf32> -> vector<32x128xf32>
    %cst_33 = arith.constant dense<0.000000e+00> : vector<128xf32>
    %87 = vector.multi_reduction <add>, %86, %cst_33 [0] : vector<32x128xf32> to vector<128xf32>
    %88 = vector.shape_cast %87 : vector<128xf32> to vector<1x128xf32>
    %89 = arith.mulf %86, %86 : vector<32x128xf32>
    %cst_34 = arith.constant dense<0.000000e+00> : vector<128xf32>
    %90 = vector.multi_reduction <add>, %89, %cst_34 [0] : vector<32x128xf32> to vector<128xf32>
    %91 = vector.shape_cast %90 : vector<128xf32> to vector<1x128xf32>
    %c8_i32_35 = arith.constant 8 : i32
    %92 = tpu.dynamic_rotate %88 by %c8_i32_35 dim 1 : vector<1x128xf32>, i32 -> vector<1x128xf32>
    %93 = arith.addf %88, %92 : vector<1x128xf32>
    %c8_i32_36 = arith.constant 8 : i32
    %94 = tpu.dynamic_rotate %91 by %c8_i32_36 dim 1 : vector<1x128xf32>, i32 -> vector<1x128xf32>
    %95 = arith.addf %91, %94 : vector<1x128xf32>
    %c16_i32_37 = arith.constant 16 : i32
    %96 = tpu.dynamic_rotate %93 by %c16_i32_37 dim 1 : vector<1x128xf32>, i32 -> vector<1x128xf32>
    %97 = arith.addf %93, %96 : vector<1x128xf32>
    %c16_i32_38 = arith.constant 16 : i32
    %98 = tpu.dynamic_rotate %95 by %c16_i32_38 dim 1 : vector<1x128xf32>, i32 -> vector<1x128xf32>
    %99 = arith.addf %95, %98 : vector<1x128xf32>
    %c32_i32_39 = arith.constant 32 : i32
    %100 = tpu.dynamic_rotate %97 by %c32_i32_39 dim 1 : vector<1x128xf32>, i32 -> vector<1x128xf32>
    %101 = arith.addf %97, %100 : vector<1x128xf32>
    %c32_i32_40 = arith.constant 32 : i32
    %102 = tpu.dynamic_rotate %99 by %c32_i32_40 dim 1 : vector<1x128xf32>, i32 -> vector<1x128xf32>
    %103 = arith.addf %99, %102 : vector<1x128xf32>
    %c64_i32_41 = arith.constant 64 : i32
    %104 = tpu.dynamic_rotate %101 by %c64_i32_41 dim 1 : vector<1x128xf32>, i32 -> vector<1x128xf32>
    %105 = arith.addf %101, %104 : vector<1x128xf32>
    %c64_i32_42 = arith.constant 64 : i32
    %106 = tpu.dynamic_rotate %103 by %c64_i32_42 dim 1 : vector<1x128xf32>, i32 -> vector<1x128xf32>
    %107 = arith.addf %103, %106 : vector<1x128xf32>
    %cst_43 = arith.constant 0.001953125 : f32
    %108 = vector.broadcast %cst_43 : f32 to vector<1x128xf32>
    %109 = arith.mulf %105, %108 : vector<1x128xf32>
    %cst_44 = arith.constant 0.001953125 : f32
    %110 = vector.broadcast %cst_44 : f32 to vector<1x128xf32>
    %111 = arith.mulf %107, %110 : vector<1x128xf32>
    %112 = arith.mulf %109, %109 : vector<1x128xf32>
    %113 = arith.subf %111, %112 : vector<1x128xf32>
    %c0_45 = arith.constant 0 : index
    %c0_46 = arith.constant 0 : index
    %114 = vector.load %arg5[%c0_45, %c0_46] : memref<1x128xf32, #tpu.memory_space<vmem>>, vector<1x128xf32>
    %cst_47 = arith.constant 9.99999974E-6 : f32
    %115 = vector.broadcast %cst_47 : f32 to vector<1x128xf32>
    %116 = arith.addf %113, %115 : vector<1x128xf32>
    %117 = math.rsqrt %116 : vector<1x128xf32>
    %118 = arith.mulf %114, %117 : vector<1x128xf32>
    %c0_48 = arith.constant 0 : index
    %c0_49 = arith.constant 0 : index
    %119 = vector.load %arg6[%c0_48, %c0_49] : memref<1x128xf32, #tpu.memory_space<vmem>>, vector<1x128xf32>
    %120 = arith.mulf %109, %118 : vector<1x128xf32>
    %121 = arith.subf %119, %120 : vector<1x128xf32>
    %122 = vector.broadcast %118 : vector<1x128xf32> to vector<32x128xf32>
    %123 = arith.mulf %86, %122 : vector<32x128xf32>
    %124 = arith.addf %0, %123 : vector<32x128xf32>
    %125 = vector.broadcast %121 : vector<1x128xf32> to vector<32x128xf32>
    %126 = arith.addf %124, %125 : vector<32x128xf32>
    %c0_50 = arith.constant 0 : index
    %c0_51 = arith.constant 0 : index
    %127 = vector.load %arg8[%c0_50, %c0_51] : memref<32x128xf32, #tpu.memory_space<vmem>>, vector<32x128xf32>
    tpu.vector_store %arg8[%c0_50, %c0_51], %126 {strides = array<i32>} : memref<32x128xf32, #tpu.memory_space<vmem>>, vector<32x128xf32>,
    return
  }
}

</mosaic_0001>

<llo_original>
// kernel: tpu_custom_call.1
$region0: #{tpu_custom_call.1}
  #allocation0 [shape = 'u32[]', space=smem, size = 0x4, offset = 0x4, fixed_abs, tag = 'smem constant byte address 0x4 - core index']
  #allocation1 [shape = 'u32[144,128]{1,0:T(1,128)}', space=vmem, size = 0x12000, scoped, tag = 'internal scratch']
  #allocation2 [shape = 'f32[1]{0:T(128)S(6)}', space=smem, size = 0x200, scoped, tag = 'scoped memory for tpu_custom_call.1']
  %s0 = inlined_call_operand.hbm [shape: f32[32,128], index: 0, kind: input, shape index: {}]
  %s1 = inlined_call_operand.hbm [shape: bf16[384,128], index: 1, kind: input, shape index: {}]
  %s2 = inlined_call_operand.hbm [shape: bf16[384,128], index: 2, kind: input, shape index: {}]
  %s3 = inlined_call_operand.vmem [shape: f32[1,128], index: 3, kind: input, shape index: {}]
  %s4 = inlined_call_operand.vmem [shape: f32[1,128], index: 4, kind: input, shape index: {}]
  %s5 = inlined_call_operand.vmem [shape: f32[1,128], index: 5, kind: input, shape index: {}]
  %s6 = inlined_call_operand.vmem [shape: f32[1,128], index: 6, kind: input, shape index: {}]
  %s7 = inlined_call_operand.<no memory space> [shape: f32[1], index: 7, kind: input, shape index: {}]
  %s8 = inlined_call_operand.hbm [shape: f32[32,128], index: 8, kind: output, shape index: {}]
  %s9 = sld [smem:[#allocation0]]
  $region54: #{tpu_custom_call.1} parent=0
    _
  %s11 = ssub.s32 1, %s9
  %s12 = scalar_select 0, %s11, %s9
  %13 = sst [smem:[#allocation2]] %s7
  $region1: #{tpu_custom_call.1} parent=0
    #allocation3 [shape = 'u8[16384]{0}', space=vmem, size = 0x4000, scoped, tag = 'input window, operand 0, single buffered']
    #allocation4 [shape = 's32[1]{0}', space=sflag, size = 0x4, scoped, tag = 'scoped memory for tpu_custom_call.1']
    #allocation5 [shape = 's32[1]{0}', space=sflag, size = 0x4, scoped, tag = 'scoped memory for tpu_custom_call.1']
    #allocation6 [shape = 'u8[98304]{0}', space=vmem, size = 0x18000, scoped, tag = 'input window, operand 1, single buffered']
    #allocation7 [shape = 's32[1]{0}', space=sflag, size = 0x4, scoped, tag = 'scoped memory for tpu_custom_call.1']
    #allocation8 [shape = 'u8[98304]{0}', space=vmem, size = 0x18000, scoped, tag = 'input window, operand 2, single buffered']
    #allocation9 [shape = 'u8[16384]{0}', space=vmem, size = 0x4000, scoped, tag = 'output window, operand 0, single buffered']
    %14 = vsyncpa [#allocation4], 0
    %15 = vsyncpa [#allocation7], 0
    %16 = vsyncpa [#allocation5], 0
    // Predicated region
    $region2: #{tpu_custom_call.1} parent=1 // pred_check
      _
    $region3: #{tpu_custom_call.1} parent=1 // pred_check_branch
      %18 = sbr.rel (0) target = $region5
    $region4: #{tpu_custom_call.1} parent=1 // pred_region
      %s20 = ssub.s32 512, 512
      %21 = vsyncadd [#allocation4], %s20
      %s22 = sshll.u32 [#allocation3], 4
      %s23 = int_to_ptr.vmem [resolvable:$true] %s22
      %28 = dma.hbm_to_vmem [thread:$0]  %s0, 512, %s23, [#allocation4], 128, 128, 8
    $region5: #{tpu_custom_call.1} parent=1 // pred_fallthru
      _
    // Predicated region
    $region6: #{tpu_custom_call.1} parent=1 // pred_check
      _
    $region7: #{tpu_custom_call.1} parent=1 // pred_check_branch
      %30 = sbr.rel (0) target = $region9
    $region8: #{tpu_custom_call.1} parent=1 // pred_region
      %s32 = ssub.s32 3072, 3072
      %33 = vsyncadd [#allocation7], %s32
      %s34 = sshll.u32 [#allocation6], 4
      %s35 = int_to_ptr.vmem [resolvable:$true] %s34
      %40 = dma.hbm_to_vmem [thread:$0]  %s1, 3072, %s35, [#allocation7], 64, 64, 4
    $region9: #{tpu_custom_call.1} parent=1 // pred_fallthru
      _
    // Predicated region
    $region10: #{tpu_custom_call.1} parent=1 // pred_check
      _
    $region11: #{tpu_custom_call.1} parent=1 // pred_check_branch
      %42 = sbr.rel (0) target = $region13
    $region12: #{tpu_custom_call.1} parent=1 // pred_region
      %s44 = ssub.s32 3072, 3072
      %45 = vsyncadd [#allocation7], %s44
      %s46 = sshll.u32 [#allocation8], 4
      %s47 = int_to_ptr.vmem [resolvable:$true] %s46
      %52 = dma.hbm_to_vmem [thread:$0]  %s2, 3072, %s47, [#allocation7], 64, 64, 4
    $region13: #{tpu_custom_call.1} parent=1 // pred_fallthru
      _
    // Predicated region
    $region14: #{tpu_custom_call.1} parent=1 // pred_check
      _
    $region15: #{tpu_custom_call.1} parent=1 // pred_check_branch
      %54 = sbr.rel (0) target = $region17
    $region16: #{tpu_custom_call.1} parent=1 // pred_region
      _
    $region17: #{tpu_custom_call.1} parent=1 // pred_fallthru
      _
    // Predicated region
    $region18: #{tpu_custom_call.1} parent=1 // pred_check
      _
    $region19: #{tpu_custom_call.1} parent=1 // pred_check_branch
      %56 = sbr.rel (0) target = $region21
    $region20: #{tpu_custom_call.1} parent=1 // pred_region
      _
    $region21: #{tpu_custom_call.1} parent=1 // pred_fallthru
      _
    // Predicated region
    $region22: #{tpu_custom_call.1} parent=1 // pred_check
      _
    $region23: #{tpu_custom_call.1} parent=1 // pred_check_branch
      %58 = sbr.rel (0) target = $region25
    $region24: #{tpu_custom_call.1} parent=1 // pred_region
      _
    $region25: #{tpu_custom_call.1} parent=1 // pred_fallthru
      _
    // Predicated region
    $region26: #{tpu_custom_call.1} parent=1 // pred_check
      _
    $region27: #{tpu_custom_call.1} parent=1 // pred_check_branch
      %60 = sbr.rel (0) target = $region29
    $region28: #{tpu_custom_call.1} parent=1 // pred_region
      _
    $region29: #{tpu_custom_call.1} parent=1 // pred_fallthru
      _
    // Predicated region
    $region30: #{tpu_custom_call.1} parent=1 // pred_check
      _
    $region31: #{tpu_custom_call.1} parent=1 // pred_check_branch
      %62 = sbr.rel (0) target = $region33
    $region32: #{tpu_custom_call.1} parent=1 // pred_region
      _
    $region33: #{tpu_custom_call.1} parent=1 // pred_fallthru
      _
    // Predicated region
    $region34: #{tpu_custom_call.1} parent=1 // pred_check
      _
    $region35: #{tpu_custom_call.1} parent=1 // pred_check_branch
      %64 = sbr.rel (0) target = $region37
    $region36: #{tpu_custom_call.1} parent=1 // pred_region
      %65 = dma.done [#allocation4], 512
    $region37: #{tpu_custom_call.1} parent=1 // pred_fallthru
      _
    // Predicated region
    $region38: #{tpu_custom_call.1} parent=1 // pred_check
      _
    $region39: #{tpu_custom_call.1} parent=1 // pred_check_branch
      %67 = sbr.rel (0) target = $region41
    $region40: #{tpu_custom_call.1} parent=1 // pred_region
      %68 = dma.done [#allocation7], 3072
    $region41: #{tpu_custom_call.1} parent=1 // pred_fallthru
      _
    // Predicated region
    $region42: #{tpu_custom_call.1} parent=1 // pred_check
      _
    $region43: #{tpu_custom_call.1} parent=1 // pred_check_branch
      %70 = sbr.rel (0) target = $region45
    $region44: #{tpu_custom_call.1} parent=1 // pred_region
      %71 = dma.done [#allocation7], 3072
    $region45: #{tpu_custom_call.1} parent=1 // pred_fallthru
      _
    %v73 = vld [vmem:[#allocation3] sm:$0xff]
    %v74 = vld [vmem:[#allocation3 + $0x8] sm:$0xff]
    %v75 = vld [vmem:[#allocation3 + $0x10] sm:$0xff]
    %v76 = vld [vmem:[#allocation3 + $0x18] sm:$0xff]
    %v77 = vlaneseq
    %v78 = vshrl.u32 %v77, 7
    %v79 = vadd.s32 %v78, 8
    %v80 = vadd.s32 %v78, 16
    %v81 = vadd.s32 %v78, 24
    %vm82 = vcmp.lt.s32.totalorder %v78, 0
    %v83 = vsub.s32 0, %v78
    %v84 = vsel %vm82, %v83, %v78
    %v85 = vshrl.u32 %v84, 4
    %v86 = vand.u32 %v84, 15
    %v87 = vsub.s32 0, %v86
    %v88 = vsel %vm82, %v87, %v86
    %vm89 = vcmp.lt.s32.totalorder %v79, 0
    %v90 = vsub.s32 0, %v79
    %v91 = vsel %vm89, %v90, %v79
    %v92 = vshrl.u32 %v91, 4
    %v93 = vand.u32 %v91, 15
    %v94 = vsub.s32 0, %v93
    %v95 = vsel %vm89, %v94, %v93
    %vm96 = vcmp.lt.s32.totalorder %v80, 0
    %v97 = vsub.s32 0, %v80
    %v98 = vsel %vm96, %v97, %v80
    %v99 = vshrl.u32 %v98, 4
    %v100 = vand.u32 %v98, 15
    %v101 = vsub.s32 0, %v100
    %v102 = vsel %vm96, %v101, %v100
    %vm103 = vcmp.lt.s32.totalorder %v81, 0
    %v104 = vsub.s32 0, %v81
    %v105 = vsel %vm103, %v104, %v81
    %v106 = vshrl.u32 %v105, 4
    %v107 = vand.u32 %v105, 15
    %v108 = vsub.s32 0, %v107
    %v109 = vsel %vm103, %v108, %v107
    %vm110 = vcmp.ne.s32.totalorder %v88, 0
    %vm111 = vcmp.ne.s32.totalorder %v95, 0
    %vm112 = vcmp.ne.s32.totalorder %v102, 0
    %vm113 = vcmp.ne.s32.totalorder %v109, 0
    %vm114 = vcmp.lt.s32.totalorder %v88, 0
    %vm115 = vcmp.lt.s32.totalorder %v95, 0
    %vm116 = vcmp.lt.s32.totalorder %v102, 0
    %vm117 = vcmp.lt.s32.totalorder %v109, 0
    %vm118 = vmand %vm114, %vm110
    %vm119 = vmand %vm115, %vm111
    %vm120 = vmand %vm116, %vm112
    %vm121 = vmand %vm117, %vm113
    %v122 = vadd.s32 %v88, 16
    %v123 = vadd.s32 %v95, 16
    %v124 = vadd.s32 %v102, 16
    %v125 = vadd.s32 %v109, 16
    %v126 = vsel %vm118, %v122, %v88
    %v127 = vsel %vm119, %v123, %v95
    %v128 = vsel %vm120, %v124, %v102
    %v129 = vsel %vm121, %v125, %v109
    %vm130 = vcmp.ne.s32.totalorder %v126, 0
    %vm131 = vcmp.ne.s32.totalorder %v127, 0
    %vm132 = vcmp.ne.s32.totalorder %v128, 0
    %vm133 = vcmp.ne.s32.totalorder %v129, 0
    %vm134 = vcmp.ne.s32.totalorder %v126, 15
    %vm135 = vcmp.ne.s32.totalorder %v127, 15
    %vm136 = vcmp.ne.s32.totalorder %v128, 15
    %vm137 = vcmp.ne.s32.totalorder %v129, 15
    %v138 = vrot.slane %v73, 7
    %v139 = vrot.slane %v74, 7
    %v140 = vrot.slane %v75, 7
    %v141 = vrot.slane %v76, 7
    %vm142 = vcmp.lt.s32.totalorder %v78, 1
    %v143 = vsel %vm142, %v140, %v141
    %v144 = vsel %vm142, %v139, %v140
    %v145 = vsel %vm142, %v138, %v139
    %v146 = vsel %vm142, %v141, %v138
    %v147 = vsel %vm130, %v146, 0.0
    %v148 = vsel %vm131, %v145, 0.0
    %v149 = vsel %vm132, %v144, 0.0
    %v150 = vsel %vm133, %v143, 0.0
    %v151 = vrot.slane %v73, 1
    %v152 = vrot.slane %v74, 1
    %v153 = vrot.slane %v75, 1
    %v154 = vrot.slane %v76, 1
    %vm155 = vcmp.lt.s32.totalorder %v78, 7
    %v156 = vsel %vm155, %v153, %v154
    %v157 = vsel %vm155, %v152, %v153
    %v158 = vsel %vm155, %v151, %v152
    %v159 = vsel %vm155, %v154, %v151
    %v160 = vsel %vm134, %v158, 0.0
    %v161 = vsel %vm135, %v157, 0.0
    %v162 = vsel %vm136, %v156, 0.0
    %v163 = vsel %vm137, %v159, 0.0
    %v164 = vpack.c.bf16 %v148, %v147
    %v165 = vpack.c.bf16 %v74, %v73
    %v166 = vpack.c.bf16 %v161, %v160
    %v167 = vpack.c.bf16 %v150, %v149
    %v168 = vpack.c.bf16 %v76, %v75
    %v169 = vpack.c.bf16 %v163, %v162
    %v170 = vld [vmem:[#allocation6] sm:$0xf]
    %v171 = vld [vmem:[#allocation6 + $0x4] sm:$0xf]
    %v172 = vld [vmem:[#allocation6 + $0x8] sm:$0xf]
    %v173 = vld [vmem:[#allocation6 + $0xc] sm:$0xf]
    %v174 = vld [vmem:[#allocation6 + $0x10] sm:$0xf]
    %v175 = vld [vmem:[#allocation6 + $0x14] sm:$0xf]
    %v176 = vld [vmem:[#allocation6 + $0x18] sm:$0xf]
    %v177 = vld [vmem:[#allocation6 + $0x1c] sm:$0xf]
    %v178 = vld [vmem:[#allocation6 + $0x20] sm:$0xf]
    %v179 = vld [vmem:[#allocation6 + $0x24] sm:$0xf]
    %v180 = vld [vmem:[#allocation6 + $0x28] sm:$0xf]
    %v181 = vld [vmem:[#allocation6 + $0x2c] sm:$0xf]
    %v182 = vld [vmem:[#allocation6 + $0x30] sm:$0xf]
    %v183 = vld [vmem:[#allocation6 + $0x34] sm:$0xf]
    %v184 = vld [vmem:[#allocation6 + $0x38] sm:$0xf]
    %v185 = vld [vmem:[#allocation6 + $0x3c] sm:$0xf]
    %v186 = vld [vmem:[#allocation6 + $0x40] sm:$0xf]
    %v187 = vld [vmem:[#allocation6 + $0x44] sm:$0xf]
    %v188 = vld [vmem:[#allocation6 + $0x48] sm:$0xf]
    %v189 = vld [vmem:[#allocation6 + $0x4c] sm:$0xf]
    %v190 = vld [vmem:[#allocation6 + $0x50] sm:$0xf]
    %v191 = vld [vmem:[#allocation6 + $0x54] sm:$0xf]
    %v192 = vld [vmem:[#allocation6 + $0x58] sm:$0xf]
    %v193 = vld [vmem:[#allocation6 + $0x5c] sm:$0xf]
    %v194 = vld [vmem:[#allocation6 + $0x60] sm:$0xf]
    %v195 = vld [vmem:[#allocation6 + $0x64] sm:$0xf]
    %v196 = vld [vmem:[#allocation6 + $0x68] sm:$0xf]
    %v197 = vld [vmem:[#allocation6 + $0x6c] sm:$0xf]
    %v198 = vld [vmem:[#allocation6 + $0x70] sm:$0xf]
    %v199 = vld [vmem:[#allocation6 + $0x74] sm:$0xf]
    %v200 = vld [vmem:[#allocation6 + $0x78] sm:$0xf]
    %v201 = vld [vmem:[#allocation6 + $0x7c] sm:$0xf]
    %v202 = vld [vmem:[#allocation6 + $0x80] sm:$0xf]
    %v203 = vld [vmem:[#allocation6 + $0x84] sm:$0xf]
    %v204 = vld [vmem:[#allocation6 + $0x88] sm:$0xf]
    %v205 = vld [vmem:[#allocation6 + $0x8c] sm:$0xf]
    %v206 = vld [vmem:[#allocation6 + $0x90] sm:$0xf]
    %v207 = vld [vmem:[#allocation6 + $0x94] sm:$0xf]
    %v208 = vld [vmem:[#allocation6 + $0x98] sm:$0xf]
    %v209 = vld [vmem:[#allocation6 + $0x9c] sm:$0xf]
    %v210 = vld [vmem:[#allocation6 + $0xa0] sm:$0xf]
    %v211 = vld [vmem:[#allocation6 + $0xa4] sm:$0xf]
    %v212 = vld [vmem:[#allocation6 + $0xa8] sm:$0xf]
    %v213 = vld [vmem:[#allocation6 + $0xac] sm:$0xf]
    %v214 = vld [vmem:[#allocation6 + $0xb0] sm:$0xf]
    %v215 = vld [vmem:[#allocation6 + $0xb4] sm:$0xf]
    %v216 = vld [vmem:[#allocation6 + $0xb8] sm:$0xf]
    %v217 = vld [vmem:[#allocation6 + $0xbc] sm:$0xf]
    %v266 = vunpack.c.l.b16 %v170
    %v267 = vunpack.c.l.b16 %v171
    %v268 = vunpack.c.l.b16 %v172
    %v269 = vunpack.c.l.b16 %v173
    %v270 = vunpack.c.l.b16 %v174
    %v271 = vunpack.c.l.b16 %v175
    %v272 = vunpack.c.l.b16 %v176
    %v273 = vunpack.c.l.b16 %v177
    %v274 = vunpack.c.l.b16 %v178
    %v275 = vunpack.c.l.b16 %v179
    %v276 = vunpack.c.l.b16 %v180
    %v277 = vunpack.c.l.b16 %v181
    %v278 = vunpack.c.l.b16 %v182
    %v279 = vunpack.c.l.b16 %v183
    %v280 = vunpack.c.l.b16 %v184
    %v281 = vunpack.c.l.b16 %v185
    %v282 = vunpack.c.l.b16 %v186
    %v283 = vunpack.c.l.b16 %v187
    %v284 = vunpack.c.l.b16 %v188
    %v285 = vunpack.c.l.b16 %v189
    %v286 = vunpack.c.l.b16 %v190
    %v287 = vunpack.c.l.b16 %v191
    %v288 = vunpack.c.l.b16 %v192
    %v289 = vunpack.c.l.b16 %v193
    %v290 = vunpack.c.l.b16 %v194
    %v291 = vunpack.c.l.b16 %v195
    %v292 = vunpack.c.l.b16 %v196
    %v293 = vunpack.c.l.b16 %v197
    %v294 = vunpack.c.l.b16 %v198
    %v295 = vunpack.c.l.b16 %v199
    %v296 = vunpack.c.l.b16 %v200
    %v297 = vunpack.c.l.b16 %v201
    %v298 = vunpack.c.l.b16 %v202
    %v299 = vunpack.c.l.b16 %v203
    %v300 = vunpack.c.l.b16 %v204
    %v301 = vunpack.c.l.b16 %v205
    %v302 = vunpack.c.l.b16 %v206
    %v303 = vunpack.c.l.b16 %v207
    %v304 = vunpack.c.l.b16 %v208
    %v305 = vunpack.c.l.b16 %v209
    %v306 = vunpack.c.l.b16 %v210
    %v307 = vunpack.c.l.b16 %v211
    %v308 = vunpack.c.l.b16 %v212
    %v309 = vunpack.c.l.b16 %v213
    %v310 = vunpack.c.l.b16 %v214
    %v311 = vunpack.c.l.b16 %v215
    %v312 = vunpack.c.l.b16 %v216
    %v313 = vunpack.c.l.b16 %v217
    %v314 = vpack.c.b16 %v267, %v266
    %v315 = vpack.c.b16 %v269, %v268
    %v316 = vpack.c.b16 %v271, %v270
    %v317 = vpack.c.b16 %v273, %v272
    %v318 = vpack.c.b16 %v275, %v274
    %v319 = vpack.c.b16 %v277, %v276
    %v320 = vpack.c.b16 %v279, %v278
    %v321 = vpack.c.b16 %v281, %v280
    %v322 = vpack.c.b16 %v283, %v282
    %v323 = vpack.c.b16 %v285, %v284
    %v324 = vpack.c.b16 %v287, %v286
    %v325 = vpack.c.b16 %v289, %v288
    %v326 = vpack.c.b16 %v291, %v290
    %v327 = vpack.c.b16 %v293, %v292
    %v328 = vpack.c.b16 %v295, %v294
    %v329 = vpack.c.b16 %v297, %v296
    %v330 = vpack.c.b16 %v299, %v298
    %v331 = vpack.c.b16 %v301, %v300
    %v332 = vpack.c.b16 %v303, %v302
    %v333 = vpack.c.b16 %v305, %v304
    %v334 = vpack.c.b16 %v307, %v306
    %v335 = vpack.c.b16 %v309, %v308
    %v336 = vpack.c.b16 %v311, %v310
    %v337 = vpack.c.b16 %v313, %v312
    %362 = vmatprep.subr.bf16.mxu0 0
    %363 = vmatpush1.bf16.msra.mxu0 %v314
    %364 = vmatprep.subr.bf16.mxu0 0
    %365 = vmatpush1.bf16.msra.mxu0 %v315
    %366 = vmatprep.subr.bf16.mxu0 0
    %367 = vmatpush1.bf16.msra.mxu0 %v316
    %368 = vmatprep.subr.bf16.mxu0 0
    %369 = vmatpush1.bf16.msra.mxu0 %v317
    %370 = vmatprep.subr.bf16.mxu0 0
    %371 = vmatpush1.bf16.msra.mxu0 %v318
    %372 = vmatprep.subr.bf16.mxu0 0
    %373 = vmatpush1.bf16.msra.mxu0 %v319
    %374 = vmatprep.subr.bf16.mxu0 0
    %375 = vmatpush1.bf16.msra.mxu0 %v320
    %376 = vmatprep.subr.bf16.mxu0 0
    %377 = vmatpush1.bf16.msra.mxu0 %v321
    %378 = vmatprep.subr.bf16.mxu0 0
    %379 = vmatpush1.bf16.msra.mxu0 %v322
    %380 = vmatprep.subr.bf16.mxu0 0
    %381 = vmatpush1.bf16.msra.mxu0 %v323
    %382 = vmatprep.subr.bf16.mxu0 0
    %383 = vmatpush1.bf16.msra.mxu0 %v324
    %384 = vmatprep.subr.bf16.mxu0 0
    %385 = vmatpush1.bf16.msra.mxu0 %v325
    %386 = vmatprep.subr.bf16.mxu0 0
    %387 = vmatpush1.bf16.msra.mxu0 %v326
    %388 = vmatprep.subr.bf16.mxu0 0
    %389 = vmatpush1.bf16.msra.mxu0 %v327
    %390 = vmatprep.subr.bf16.mxu0 0
    %391 = vmatpush1.bf16.msra.mxu0 %v328
    %392 = vmatprep.subr.bf16.mxu0 0
    %393 = vmatpush1.bf16.msra.mxu0 %v329
    %394 = vmatprep.mubr.bf16.mxu0 %v165
    %395 = vmatmul.mubr.bf16.gmra.mrb[0].mxu0 %v164
    %v396 = vpop.f32.mrb[0].mxu0
    %v397 = vadd.f32 0.0, %v396
    %v398 = vpop.f32.mrb[0].mxu0
    %v399 = vpop.f32.mrb[0].mxu0
    %v400 = vadd.f32 0.0, %v399
    %v401 = vpop.f32.mrb[0].mxu0
    %402 = vmatprep.mubr.bf16.mxu0 %v168
    %403 = vmatmul.mubr.bf16.gmra.mrb[0].mxu0 %v167
    %v404 = vpop.f32.mrb[0].mxu0
    %v405 = vadd.f32 0.0, %v404
    %v406 = vpop.f32.mrb[0].mxu0
    %v407 = vpop.f32.mrb[0].mxu0
    %v408 = vadd.f32 0.0, %v407
    %v409 = vpop.f32.mrb[0].mxu0
    %410 = vdwg.mxu0
    %411 = vmatprep.subr.bf16.mxu0 0
    %412 = vmatpush1.bf16.msra.mxu0 %v330
    %413 = vmatprep.subr.bf16.mxu0 0
    %414 = vmatpush1.bf16.msra.mxu0 %v331
    %415 = vmatprep.subr.bf16.mxu0 0
    %416 = vmatpush1.bf16.msra.mxu0 %v332
    %417 = vmatprep.subr.bf16.mxu0 0
    %418 = vmatpush1.bf16.msra.mxu0 %v333
    %419 = vmatprep.subr.bf16.mxu0 0
    %420 = vmatpush1.bf16.msra.mxu0 %v334
    %421 = vmatprep.subr.bf16.mxu0 0
    %422 = vmatpush1.bf16.msra.mxu0 %v335
    %423 = vmatprep.subr.bf16.mxu0 0
    %424 = vmatpush1.bf16.msra.mxu0 %v336
    %425 = vmatprep.subr.bf16.mxu0 0
    %426 = vmatpush1.bf16.msra.mxu0 %v337
    %427 = vmatprep.subr.bf16.mxu0 0
    %428 = vmatpush1.bf16.msra.mxu0 0
    %429 = vmatprep.subr.bf16.mxu0 0
    %430 = vmatpush1.bf16.msra.mxu0 0
    %431 = vmatprep.subr.bf16.mxu0 0
    %432 = vmatpush1.bf16.msra.mxu0 0
    %433 = vmatprep.subr.bf16.mxu0 0
    %434 = vmatpush1.bf16.msra.mxu0 0
    %435 = vmatprep.subr.bf16.mxu0 0
    %436 = vmatpush1.bf16.msra.mxu0 0
    %437 = vmatprep.subr.bf16.mxu0 0
    %438 = vmatpush1.bf16.msra.mxu0 0
    %439 = vmatprep.subr.bf16.mxu0 0
    %440 = vmatpush1.bf16.msra.mxu0 0
    %441 = vmatprep.subr.bf16.mxu0 0
    %442 = vmatpush1.bf16.msra.mxu0 0
    %443 = vmatprep.mubr.bf16.mxu0 0
    %444 = vmatmul.mubr.bf16.gmra.mrb[0].mxu0 %v166
    %v445 = vpop.f32.mrb[0].mxu0
    %v446 = vadd.f32 %v397, %v445
    %v447 = vpop.f32.mrb[0].mxu0
    %v448 = vpop.f32.mrb[0].mxu0
    %v449 = vadd.f32 %v400, %v448
    %v450 = vpop.f32.mrb[0].mxu0
    %451 = vmatprep.mubr.bf16.mxu0 0
    %452 = vmatmul.mubr.bf16.gmra.mrb[0].mxu0 %v169
    %v453 = vpop.f32.mrb[0].mxu0
    %v454 = vadd.f32 %v405, %v453
    %v455 = vpop.f32.mrb[0].mxu0
    %v456 = vpop.f32.mrb[0].mxu0
    %v457 = vadd.f32 %v408, %v456
    %v458 = vpop.f32.mrb[0].mxu0
    %459 = vdwg.mxu0
    %v460 = vadd.f32 %v446, %v449
    %v461 = vadd.f32 %v460, %v454
    %v462 = vadd.f32 %v461, %v457
    %v463 = vrot.slane %v462, 4
    %v464 = vadd.f32 %v462, %v463
    %v465 = vrot.slane %v464, 2
    %v466 = vadd.f32 %v464, %v465
    %v467 = vrot.slane %v466, 1
    %v468 = vadd.f32 %v466, %v467
    %v469 = vmul.f32 %v446, %v446
    %v470 = vmul.f32 %v449, %v449
    %v471 = vmul.f32 %v454, %v454
    %v472 = vmul.f32 %v457, %v457
    %v473 = vadd.f32 %v469, %v470
    %v474 = vadd.f32 %v473, %v471
    %v475 = vadd.f32 %v474, %v472
    %v476 = vrot.slane %v475, 4
    %v477 = vadd.f32 %v475, %v476
    %v478 = vrot.slane %v477, 2
    %v479 = vadd.f32 %v477, %v478
    %v480 = vrot.slane %v479, 1
    %v481 = vadd.f32 %v479, %v480
    %482 = vrot.lane.b32.xlu0 %v468, 8
    %v483 = vpop.permute.xlu0 %482
    %v484 = vadd.f32 %v468, %v483
    %485 = vrot.lane.b32.xlu0 %v481, 8
    %v486 = vpop.permute.xlu0 %485
    %v487 = vadd.f32 %v481, %v486
    %488 = vrot.lane.b32.xlu0 %v484, 16
    %v489 = vpop.permute.xlu0 %488
    %v490 = vadd.f32 %v484, %v489
    %491 = vrot.lane.b32.xlu0 %v487, 16
    %v492 = vpop.permute.xlu0 %491
    %v493 = vadd.f32 %v487, %v492
    %494 = vrot.lane.b32.xlu0 %v490, 32
    %v495 = vpop.permute.xlu0 %494
    %v496 = vadd.f32 %v490, %v495
    %497 = vrot.lane.b32.xlu0 %v493, 32
    %v498 = vpop.permute.xlu0 %497
    %v499 = vadd.f32 %v493, %v498
    %500 = vrot.lane.b32.xlu0 %v496, 64
    %v501 = vpop.permute.xlu0 %500
    %v502 = vadd.f32 %v496, %v501
    %503 = vrot.lane.b32.xlu0 %v499, 64
    %v504 = vpop.permute.xlu0 %503
    %v505 = vadd.f32 %v499, %v504
    %v506 = vmul.f32 %v502, 0.001953125
    %v507 = vmul.f32 %v505, 0.001953125
    %v508 = vmul.f32 %v506, %v506
    %v509 = vsub.f32 %v507, %v508
    %v510 = vld [vmem:[%s3] sm:$0x1]
    %v511 = vadd.f32 %v509, 1e-05
    %v512 = vrsqrt.pop %v511
    %v513 = vmul.f32 %v510, %v512
    %v514 = vld [vmem:[%s4] sm:$0x1]
    %v515 = vmul.f32 %v506, %v513
    %v516 = vsub.f32 %v514, %v515
    %s517 = sld [smem:[#allocation2]]
    %v519 = vlaneseq
    %v520 = vshrl.u32 %v519, 7
    %v521 = vsub.s32 0, %v520
    %v522 = vrot.slane %v513, %v521
    %v524 = vmul.f32 %v446, %v522
    %v525 = vmul.f32 %v449, %v522
    %v526 = vmul.f32 %v454, %v522
    %v527 = vmul.f32 %v457, %v522
    %v529 = vlaneseq
    %v530 = vshrl.u32 %v529, 7
    %v531 = vsub.s32 0, %v530
    %v532 = vrot.slane %v516, %v531
    %v534 = vadd.f32 %v524, %v532
    %v535 = vadd.f32 %v525, %v532
    %v536 = vadd.f32 %v526, %v532
    %v537 = vadd.f32 %v527, %v532
    %vm538 = vcmp.ge.f32.partialorder %v534, 0.0
    %vm539 = vcmp.ge.f32.partialorder %v535, 0.0
    %vm540 = vcmp.ge.f32.partialorder %v536, 0.0
    %vm541 = vcmp.ge.f32.partialorder %v537, 0.0
    %v542 = vstv %s517
    %v543 = vmul.f32 %v542, %v534
    %v544 = vmul.f32 %v542, %v535
    %v545 = vmul.f32 %v542, %v536
    %v546 = vmul.f32 %v542, %v537
    %v547 = vsel %vm538, %v534, %v543
    %v548 = vsel %vm539, %v535, %v544
    %v549 = vsel %vm540, %v536, %v545
    %v550 = vsel %vm541, %v537, %v546
    %v551 = vrot.slane %v547, 7
    %v552 = vrot.slane %v548, 7
    %v553 = vrot.slane %v549, 7
    %v554 = vrot.slane %v550, 7
    %v555 = vsel %vm142, %v553, %v554
    %v556 = vsel %vm142, %v552, %v553
    %v557 = vsel %vm142, %v551, %v552
    %v558 = vsel %vm142, %v554, %v551
    %v559 = vsel %vm130, %v558, 0.0
    %v560 = vsel %vm131, %v557, 0.0
    %v561 = vsel %vm132, %v556, 0.0
    %v562 = vsel %vm133, %v555, 0.0
    %v563 = vrot.slane %v547, 1
    %v564 = vrot.slane %v548, 1
    %v565 = vrot.slane %v549, 1
    %v566 = vrot.slane %v550, 1
    %v567 = vsel %vm155, %v565, %v566
    %v568 = vsel %vm155, %v564, %v565
    %v569 = vsel %vm155, %v563, %v564
    %v570 = vsel %vm155, %v566, %v563
    %v571 = vsel %vm134, %v569, 0.0
    %v572 = vsel %vm135, %v568, 0.0
    %v573 = vsel %vm136, %v567, 0.0
    %v574 = vsel %vm137, %v570, 0.0
    %v575 = vpack.c.bf16 %v560, %v559
    %v576 = vpack.c.bf16 %v548, %v547
    %v577 = vpack.c.bf16 %v572, %v571
    %v578 = vpack.c.bf16 %v562, %v561
    %v579 = vpack.c.bf16 %v550, %v549
    %v580 = vpack.c.bf16 %v574, %v573
    %v581 = vld [vmem:[#allocation8] sm:$0xf]
    %v582 = vld [vmem:[#allocation8 + $0x4] sm:$0xf]
    %v583 = vld [vmem:[#allocation8 + $0x8] sm:$0xf]
    %v584 = vld [vmem:[#allocation8 + $0xc] sm:$0xf]
    %v585 = vld [vmem:[#allocation8 + $0x10] sm:$0xf]
    %v586 = vld [vmem:[#allocation8 + $0x14] sm:$0xf]
    %v587 = vld [vmem:[#allocation8 + $0x18] sm:$0xf]
    %v588 = vld [vmem:[#allocation8 + $0x1c] sm:$0xf]
    %v589 = vld [vmem:[#allocation8 + $0x20] sm:$0xf]
    %v590 = vld [vmem:[#allocation8 + $0x24] sm:$0xf]
    %v591 = vld [vmem:[#allocation8 + $0x28] sm:$0xf]
    %v592 = vld [vmem:[#allocation8 + $0x2c] sm:$0xf]
    %v593 = vld [vmem:[#allocation8 + $0x30] sm:$0xf]
    %v594 = vld [vmem:[#allocation8 + $0x34] sm:$0xf]
    %v595 = vld [vmem:[#allocation8 + $0x38] sm:$0xf]
    %v596 = vld [vmem:[#allocation8 + $0x3c] sm:$0xf]
    %v597 = vld [vmem:[#allocation8 + $0x40] sm:$0xf]
    %v598 = vld [vmem:[#allocation8 + $0x44] sm:$0xf]
    %v599 = vld [vmem:[#allocation8 + $0x48] sm:$0xf]
    %v600 = vld [vmem:[#allocation8 + $0x4c] sm:$0xf]
    %v601 = vld [vmem:[#allocation8 + $0x50] sm:$0xf]
    %v602 = vld [vmem:[#allocation8 + $0x54] sm:$0xf]
    %v603 = vld [vmem:[#allocation8 + $0x58] sm:$0xf]
    %v604 = vld [vmem:[#allocation8 + $0x5c] sm:$0xf]
    %v605 = vld [vmem:[#allocation8 + $0x60] sm:$0xf]
    %v606 = vld [vmem:[#allocation8 + $0x64] sm:$0xf]
    %v607 = vld [vmem:[#allocation8 + $0x68] sm:$0xf]
    %v608 = vld [vmem:[#allocation8 + $0x6c] sm:$0xf]
    %v609 = vld [vmem:[#allocation8 + $0x70] sm:$0xf]
    %v610 = vld [vmem:[#allocation8 + $0x74] sm:$0xf]
    %v611 = vld [vmem:[#allocation8 + $0x78] sm:$0xf]
    %v612 = vld [vmem:[#allocation8 + $0x7c] sm:$0xf]
    %v613 = vld [vmem:[#allocation8 + $0x80] sm:$0xf]
    %v614 = vld [vmem:[#allocation8 + $0x84] sm:$0xf]
    %v615 = vld [vmem:[#allocation8 + $0x88] sm:$0xf]
    %v616 = vld [vmem:[#allocation8 + $0x8c] sm:$0xf]
    %v617 = vld [vmem:[#allocation8 + $0x90] sm:$0xf]
    %v618 = vld [vmem:[#allocation8 + $0x94] sm:$0xf]
    %v619 = vld [vmem:[#allocation8 + $0x98] sm:$0xf]
    %v620 = vld [vmem:[#allocation8 + $0x9c] sm:$0xf]
    %v621 = vld [vmem:[#allocation8 + $0xa0] sm:$0xf]
    %v622 = vld [vmem:[#allocation8 + $0xa4] sm:$0xf]
    %v623 = vld [vmem:[#allocation8 + $0xa8] sm:$0xf]
    %v624 = vld [vmem:[#allocation8 + $0xac] sm:$0xf]
    %v625 = vld [vmem:[#allocation8 + $0xb0] sm:$0xf]
    %v626 = vld [vmem:[#allocation8 + $0xb4] sm:$0xf]
    %v627 = vld [vmem:[#allocation8 + $0xb8] sm:$0xf]
    %v628 = vld [vmem:[#allocation8 + $0xbc] sm:$0xf]
    %v677 = vunpack.c.l.b16 %v581
    %v678 = vunpack.c.l.b16 %v582
    %v679 = vunpack.c.l.b16 %v583
    %v680 = vunpack.c.l.b16 %v584
    %v681 = vunpack.c.l.b16 %v585
    %v682 = vunpack.c.l.b16 %v586
    %v683 = vunpack.c.l.b16 %v587
    %v684 = vunpack.c.l.b16 %v588
    %v685 = vunpack.c.l.b16 %v589
    %v686 = vunpack.c.l.b16 %v590
    %v687 = vunpack.c.l.b16 %v591
    %v688 = vunpack.c.l.b16 %v592
    %v689 = vunpack.c.l.b16 %v593
    %v690 = vunpack.c.l.b16 %v594
    %v691 = vunpack.c.l.b16 %v595
    %v692 = vunpack.c.l.b16 %v596
    %v693 = vunpack.c.l.b16 %v597
    %v694 = vunpack.c.l.b16 %v598
    %v695 = vunpack.c.l.b16 %v599
    %v696 = vunpack.c.l.b16 %v600
    %v697 = vunpack.c.l.b16 %v601
    %v698 = vunpack.c.l.b16 %v602
    %v699 = vunpack.c.l.b16 %v603
    %v700 = vunpack.c.l.b16 %v604
    %v701 = vunpack.c.l.b16 %v605
    %v702 = vunpack.c.l.b16 %v606
    %v703 = vunpack.c.l.b16 %v607
    %v704 = vunpack.c.l.b16 %v608
    %v705 = vunpack.c.l.b16 %v609
    %v706 = vunpack.c.l.b16 %v610
    %v707 = vunpack.c.l.b16 %v611
    %v708 = vunpack.c.l.b16 %v612
    %v709 = vunpack.c.l.b16 %v613
    %v710 = vunpack.c.l.b16 %v614
    %v711 = vunpack.c.l.b16 %v615
    %v712 = vunpack.c.l.b16 %v616
    %v713 = vunpack.c.l.b16 %v617
    %v714 = vunpack.c.l.b16 %v618
    %v715 = vunpack.c.l.b16 %v619
    %v716 = vunpack.c.l.b16 %v620
    %v717 = vunpack.c.l.b16 %v621
    %v718 = vunpack.c.l.b16 %v622
    %v719 = vunpack.c.l.b16 %v623
    %v720 = vunpack.c.l.b16 %v624
    %v721 = vunpack.c.l.b16 %v625
    %v722 = vunpack.c.l.b16 %v626
    %v723 = vunpack.c.l.b16 %v627
    %v724 = vunpack.c.l.b16 %v628
    %v725 = vpack.c.b16 %v678, %v677
    %v726 = vpack.c.b16 %v680, %v679
    %v727 = vpack.c.b16 %v682, %v681
    %v728 = vpack.c.b16 %v684, %v683
    %v729 = vpack.c.b16 %v686, %v685
    %v730 = vpack.c.b16 %v688, %v687
    %v731 = vpack.c.b16 %v690, %v689
    %v732 = vpack.c.b16 %v692, %v691
    %v733 = vpack.c.b16 %v694, %v693
    %v734 = vpack.c.b16 %v696, %v695
    %v735 = vpack.c.b16 %v698, %v697
    %v736 = vpack.c.b16 %v700, %v699
    %v737 = vpack.c.b16 %v702, %v701
    %v738 = vpack.c.b16 %v704, %v703
    %v739 = vpack.c.b16 %v706, %v705
    %v740 = vpack.c.b16 %v708, %v707
    %v741 = vpack.c.b16 %v710, %v709
    %v742 = vpack.c.b16 %v712, %v711
    %v743 = vpack.c.b16 %v714, %v713
    %v744 = vpack.c.b16 %v716, %v715
    %v745 = vpack.c.b16 %v718, %v717
    %v746 = vpack.c.b16 %v720, %v719
    %v747 = vpack.c.b16 %v722, %v721
    %v748 = vpack.c.b16 %v724, %v723
    %773 = vmatprep.subr.bf16.mxu0 0
    %774 = vmatpush1.bf16.msra.mxu0 %v725
    %775 = vmatprep.subr.bf16.mxu0 0
    %776 = vmatpush1.bf16.msra.mxu0 %v726
    %777 = vmatprep.subr.bf16.mxu0 0
    %778 = vmatpush1.bf16.msra.mxu0 %v727
    %779 = vmatprep.subr.bf16.mxu0 0
    %780 = vmatpush1.bf16.msra.mxu0 %v728
    %781 = vmatprep.subr.bf16.mxu0 0
    %782 = vmatpush1.bf16.msra.mxu0 %v729
    %783 = vmatprep.subr.bf16.mxu0 0
    %784 = vmatpush1.bf16.msra.mxu0 %v730
    %785 = vmatprep.subr.bf16.mxu0 0
    %786 = vmatpush1.bf16.msra.mxu0 %v731
    %787 = vmatprep.subr.bf16.mxu0 0
    %788 = vmatpush1.bf16.msra.mxu0 %v732
    %789 = vmatprep.subr.bf16.mxu0 0
    %790 = vmatpush1.bf16.msra.mxu0 %v733
    %791 = vmatprep.subr.bf16.mxu0 0
    %792 = vmatpush1.bf16.msra.mxu0 %v734
    %793 = vmatprep.subr.bf16.mxu0 0
    %794 = vmatpush1.bf16.msra.mxu0 %v735
    %795 = vmatprep.subr.bf16.mxu0 0
    %796 = vmatpush1.bf16.msra.mxu0 %v736
    %797 = vmatprep.subr.bf16.mxu0 0
    %798 = vmatpush1.bf16.msra.mxu0 %v737
    %799 = vmatprep.subr.bf16.mxu0 0
    %800 = vmatpush1.bf16.msra.mxu0 %v738
    %801 = vmatprep.subr.bf16.mxu0 0
    %802 = vmatpush1.bf16.msra.mxu0 %v739
    %803 = vmatprep.subr.bf16.mxu0 0
    %804 = vmatpush1.bf16.msra.mxu0 %v740
    %805 = vmatprep.mubr.bf16.mxu0 %v576
    %806 = vmatmul.mubr.bf16.gmra.mrb[0].mxu0 %v575
    %v807 = vpop.f32.mrb[0].mxu0
    %v808 = vadd.f32 0.0, %v807
    %v809 = vpop.f32.mrb[0].mxu0
    %v810 = vpop.f32.mrb[0].mxu0
    %v811 = vadd.f32 0.0, %v810
    %v812 = vpop.f32.mrb[0].mxu0
    %813 = vmatprep.mubr.bf16.mxu0 %v579
    %814 = vmatmul.mubr.bf16.gmra.mrb[0].mxu0 %v578
    %v815 = vpop.f32.mrb[0].mxu0
    %v816 = vadd.f32 0.0, %v815
    %v817 = vpop.f32.mrb[0].mxu0
    %v818 = vpop.f32.mrb[0].mxu0
    %v819 = vadd.f32 0.0, %v818
    %v820 = vpop.f32.mrb[0].mxu0
    %821 = vdwg.mxu0
    %822 = vmatprep.subr.bf16.mxu0 0
    %823 = vmatpush1.bf16.msra.mxu0 %v741
    %824 = vmatprep.subr.bf16.mxu0 0
    %825 = vmatpush1.bf16.msra.mxu0 %v742
    %826 = vmatprep.subr.bf16.mxu0 0
    %827 = vmatpush1.bf16.msra.mxu0 %v743
    %828 = vmatprep.subr.bf16.mxu0 0
    %829 = vmatpush1.bf16.msra.mxu0 %v744
    %830 = vmatprep.subr.bf16.mxu0 0
    %831 = vmatpush1.bf16.msra.mxu0 %v745
    %832 = vmatprep.subr.bf16.mxu0 0
    %833 = vmatpush1.bf16.msra.mxu0 %v746
    %834 = vmatprep.subr.bf16.mxu0 0
    %835 = vmatpush1.bf16.msra.mxu0 %v747
    %836 = vmatprep.subr.bf16.mxu0 0
    %837 = vmatpush1.bf16.msra.mxu0 %v748
    %838 = vmatprep.subr.bf16.mxu0 0
    %839 = vmatpush1.bf16.msra.mxu0 0
    %840 = vmatprep.subr.bf16.mxu0 0
    %841 = vmatpush1.bf16.msra.mxu0 0
    %842 = vmatprep.subr.bf16.mxu0 0
    %843 = vmatpush1.bf16.msra.mxu0 0
    %844 = vmatprep.subr.bf16.mxu0 0
    %845 = vmatpush1.bf16.msra.mxu0 0
    %846 = vmatprep.subr.bf16.mxu0 0
    %847 = vmatpush1.bf16.msra.mxu0 0
    %848 = vmatprep.subr.bf16.mxu0 0
    %849 = vmatpush1.bf16.msra.mxu0 0
    %850 = vmatprep.subr.bf16.mxu0 0
    %851 = vmatpush1.bf16.msra.mxu0 0
    %852 = vmatprep.subr.bf16.mxu0 0
    %853 = vmatpush1.bf16.msra.mxu0 0
    %854 = vmatprep.mubr.bf16.mxu0 0
    %855 = vmatmul.mubr.bf16.gmra.mrb[0].mxu0 %v577
    %v856 = vpop.f32.mrb[0].mxu0
    %v857 = vadd.f32 %v808, %v856
    %v858 = vpop.f32.mrb[0].mxu0
    %v859 = vpop.f32.mrb[0].mxu0
    %v860 = vadd.f32 %v811, %v859
    %v861 = vpop.f32.mrb[0].mxu0
    %862 = vmatprep.mubr.bf16.mxu0 0
    %863 = vmatmul.mubr.bf16.gmra.mrb[0].mxu0 %v580
    %v864 = vpop.f32.mrb[0].mxu0
    %v865 = vadd.f32 %v816, %v864
    %v866 = vpop.f32.mrb[0].mxu0
    %v867 = vpop.f32.mrb[0].mxu0
    %v868 = vadd.f32 %v819, %v867
    %v869 = vpop.f32.mrb[0].mxu0
    %870 = vdwg.mxu0
    %v871 = vadd.f32 %v857, %v860
    %v872 = vadd.f32 %v871, %v865
    %v873 = vadd.f32 %v872, %v868
    %v874 = vrot.slane %v873, 4
    %v875 = vadd.f32 %v873, %v874
    %v876 = vrot.slane %v875, 2
    %v877 = vadd.f32 %v875, %v876
    %v878 = vrot.slane %v877, 1
    %v879 = vadd.f32 %v877, %v878
    %v880 = vmul.f32 %v857, %v857
    %v881 = vmul.f32 %v860, %v860
    %v882 = vmul.f32 %v865, %v865
    %v883 = vmul.f32 %v868, %v868
    %v884 = vadd.f32 %v880, %v881
    %v885 = vadd.f32 %v884, %v882
    %v886 = vadd.f32 %v885, %v883
    %v887 = vrot.slane %v886, 4
    %v888 = vadd.f32 %v886, %v887
    %v889 = vrot.slane %v888, 2
    %v890 = vadd.f32 %v888, %v889
    %v891 = vrot.slane %v890, 1
    %v892 = vadd.f32 %v890, %v891
    %893 = vrot.lane.b32.xlu0 %v879, 8
    %v894 = vpop.permute.xlu0 %893
    %v895 = vadd.f32 %v879, %v894
    %896 = vrot.lane.b32.xlu0 %v892, 8
    %v897 = vpop.permute.xlu0 %896
    %v898 = vadd.f32 %v892, %v897
    %899 = vrot.lane.b32.xlu0 %v895, 16
    %v900 = vpop.permute.xlu0 %899
    %v901 = vadd.f32 %v895, %v900
    %902 = vrot.lane.b32.xlu0 %v898, 16
    %v903 = vpop.permute.xlu0 %902
    %v904 = vadd.f32 %v898, %v903
    %905 = vrot.lane.b32.xlu0 %v901, 32
    %v906 = vpop.permute.xlu0 %905
    %v907 = vadd.f32 %v901, %v906
    %908 = vrot.lane.b32.xlu0 %v904, 32
    %v909 = vpop.permute.xlu0 %908
    %v910 = vadd.f32 %v904, %v909
    %911 = vrot.lane.b32.xlu0 %v907, 64
    %v912 = vpop.permute.xlu0 %911
    %v913 = vadd.f32 %v907, %v912
    %914 = vrot.lane.b32.xlu0 %v910, 64
    %v915 = vpop.permute.xlu0 %914
    %v916 = vadd.f32 %v910, %v915
    %v917 = vmul.f32 %v913, 0.001953125
    %v918 = vmul.f32 %v916, 0.001953125
    %v919 = vmul.f32 %v917, %v917
    %v920 = vsub.f32 %v918, %v919
    %v921 = vld [vmem:[%s5] sm:$0x1]
    %v922 = vadd.f32 %v920, 1e-05
    %v923 = vrsqrt.pop %v922
    %v924 = vmul.f32 %v921, %v923
    %v925 = vld [vmem:[%s6] sm:$0x1]
    %v926 = vmul.f32 %v917, %v924
    %v927 = vsub.f32 %v925, %v926
    %v929 = vlaneseq
    %v930 = vshrl.u32 %v929, 7
    %v931 = vsub.s32 0, %v930
    %v932 = vrot.slane %v924, %v931
    %v934 = vmul.f32 %v857, %v932
    %v935 = vmul.f32 %v860, %v932
    %v936 = vmul.f32 %v865, %v932
    %v937 = vmul.f32 %v868, %v932
    %v938 = vadd.f32 %v73, %v934
    %v939 = vadd.f32 %v74, %v935
    %v940 = vadd.f32 %v75, %v936
    %v941 = vadd.f32 %v76, %v937
    %v943 = vlaneseq
    %v944 = vshrl.u32 %v943, 7
    %v945 = vsub.s32 0, %v944
    %v946 = vrot.slane %v927, %v945
    %v948 = vadd.f32 %v938, %v946
    %v949 = vadd.f32 %v939, %v946
    %v950 = vadd.f32 %v940, %v946
    %v951 = vadd.f32 %v941, %v946
    %952 = vst [vmem:[#allocation9] sm:$0xff] %v948
    %953 = vst [vmem:[#allocation9 + $0x8] sm:$0xff] %v949
    %954 = vst [vmem:[#allocation9 + $0x10] sm:$0xff] %v950
    %955 = vst [vmem:[#allocation9 + $0x18] sm:$0xff] %v951
    // Predicated region
    $region46: #{tpu_custom_call.1} parent=1 // pred_check
      _
    $region47: #{tpu_custom_call.1} parent=1 // pred_check_branch
      %957 = sbr.rel (0) target = $region49
    $region48: #{tpu_custom_call.1} parent=1 // pred_region
      %s959 = ssub.s32 512, 512
      %960 = vsyncadd [#allocation5], %s959
      %s961 = sshll.u32 [#allocation9], 4
      %s962 = int_to_ptr.vmem [resolvable:$true] %s961
      %967 = dma.vmem_to_hbm [thread:$0]  %s962, 512, %s8, [#allocation5], 128, 128, 8
    $region49: #{tpu_custom_call.1} parent=1 // pred_fallthru
      _
    // Predicated region
    $region50: #{tpu_custom_call.1} parent=1 // pred_check
      _
    $region51: #{tpu_custom_call.1} parent=1 // pred_check_branch
      %969 = sbr.rel (0) target = $region53
    $region52: #{tpu_custom_call.1} parent=1 // pred_region
      %970 = dma.done [#allocation5], 512
    $region53: #{tpu_custom_call.1} parent=1 // pred_fallthru
      _
    %971 = vsyncpa [#allocation4], 1
    %972 = vsyncpa [#allocation7], 1
    %973 = vsyncpa [#allocation5], 1

</llo_original>
